<compile_context>
chip_gen: v5e
topology: v5e:2x2
jax: 0.10.0
libtpu: 0.0.40
codegen_flags: <defaults>
</compile_context>

<pallas_src>
import functools
import math

import numpy as np
import jax
import jax.numpy as jnp
from jax import lax
from jax.experimental import pallas as pl
from jax.experimental.pallas import tpu as pltpu


_KS = 17                      # gaussian kernel size
_PAD = (_KS - 1) // 2         # 8
_SOBEL_V = ((1.0, 2.0, 1.0), (0.0, 0.0, 0.0), (-1.0, -2.0, 1.0))   # as in the module
_SOBEL_H = ((1.0, 0.0, -1.0), (2.0, 0.0, -2.0), (1.0, 0.0, -1.0))
_SIGMA = 5.0


def _gauss1d():
    """Normalized 1-D gaussian; outer(g1, g1) == the module's normalized 2-D kernel."""
    mean = (_KS - 1) / 2.0
    ax = np.arange(_KS, dtype=np.float64)
    e = np.exp(-((ax - mean) ** 2) / (2.0 * _SIGMA ** 2))
    return tuple((e / e.sum()).tolist())


def _gauss2d():
    """2-D kernel built exactly like the PyTorch module (used by the reference)."""
    var = _SIGMA ** 2
    mean = (_KS - 1) / 2.0
    ax = np.arange(_KS, dtype=np.float64)
    g = (1.0 / (2.0 * math.pi * var)) * np.exp(
        -(((ax[None, :] - mean) ** 2) + ((ax[:, None] - mean) ** 2)) / (2.0 * var))
    g = g / g.sum()
    return jnp.asarray(g, jnp.float32)


# ---------------------------------------------------------------------------
# Pallas kernel: fused sobel + threshold + separable gaussian + weight combine
# ---------------------------------------------------------------------------
def _weightmap_kernel(labp_ref, out_ref, *, B, H, W, g1):
    # labp_ref : (B, H + 2*(_PAD+1), W + 2*(_PAD+1))  zero-padded label, VMEM
    # out_ref  : (B, H, W)   -> out[b1, b2, :, :] block (leading dim squeezed)
    b1 = pl.program_id(0)
    He, We = H + 2 * _PAD, W + 2 * _PAD          # extended (blur-input) domain

    lp = labp_ref[b1]                            # (He + 2, We + 2) = label[b1] padded by 9

    # --- Sobel (cross-correlation, zero pad 1), evaluated on the extended domain ---
    v = jnp.zeros((He, We), jnp.float32)
    h = jnp.zeros((He, We), jnp.float32)
    for dy in range(3):
        for dx in range(3):
            win = lp[dy:dy + He, dx:dx + We]
            kv = _SOBEL_V[dy][dx]
            kh = _SOBEL_H[dy][dx]
            if kv != 0.0:
                v = v + kv * win
            if kh != 0.0:
                h = h + kh * win
    edge = ((jnp.abs(v) + jnp.abs(h)) > 0.0).astype(jnp.float32)

    # Zero outside the valid HxW region == the zero-padding conv2d(edge, ..., padding=8) uses.
    ri = lax.broadcasted_iota(jnp.int32, (He, We), 0)
    ci = lax.broadcasted_iota(jnp.int32, (He, We), 1)
    inside = (ri >= _PAD) & (ri < _PAD + H) & (ci >= _PAD) & (ci < _PAD + W)
    edge = jnp.where(inside, edge, 0.0)

    # --- separable 17x17 gaussian blur (valid conv over the extended domain) ---
    rb = jnp.zeros((He, W), jnp.float32)
    for d in range(_KS):                         # row pass (lane axis)
        rb = rb + g1[d] * edge[:, d:d + W]
    bl = jnp.zeros((H, W), jnp.float32)
    for d in range(_KS):                         # column pass (sublane axis)
        bl = bl + g1[d] * rb[d:d + H, :]

    # --- class-balance weights w_c (matches torch broadcasting, incl. batch) ---
    off = _PAD + 1
    lab = lp[off:off + H, off:off + W]                          # label[b1]  (H, W)
    lab_all = labp_ref[...][:, off:off + H, off:off + W]        # label[:]   (B, H, W)
    inv_w2 = 1.0 / float(W * W)
    positive = lab_all * inv_w2                                 # (B, H, W)
    wc = lab[None] * positive + (1.0 - lab[None]) * (1.0 - positive)

    out_ref[...] = (5.0 * bl[None] + wc).astype(out_ref.dtype)  # (B, H, W)


@jax.jit
def weight_map_forward(label):
    """label: (B, 1, H, W) float -> (B, B, H, W) (PyTorch broadcast semantics)."""
    label = label.astype(jnp.float32)
    B, C, H, W = label.shape
    assert C == 1, "WeightMap expects a single-channel label map"
    lab = label[:, 0]                                   # (B, H, W)
    p = _PAD + 1                                        # 9 = gaussian pad + sobel pad
    labp = jnp.pad(lab, ((0, 0), (p, p), (p, p)))       # single host-side zero pad
    Hp, Wp = H + 2 * p, W + 2 * p

    kernel = functools.partial(_weightmap_kernel, B=B, H=H, W=W, g1=_gauss1d())
    return pl.pallas_call(
        kernel,
        out_shape=jax.ShapeDtypeStruct((B, B, H, W), jnp.float32),
        grid=(B,),
        in_specs=[pl.BlockSpec((B, Hp, Wp), lambda b: (0, 0, 0))],
        out_specs=pl.BlockSpec((None, B, H, W), lambda b: (b, 0, 0, 0)),
        compiler_params=pltpu.CompilerParams(dimension_semantics=("parallel",)),
    )(labp)


# ---------------------------------------------------------------------------
# pure-JAX reference (independent code path) for correctness check
# ---------------------------------------------------------------------------
def reference_forward(label):
    label = label.astype(jnp.float32)
    W = label.shape[-1]
    positive = jnp.sum(label, axis=1) / (W ** 2)         # (B, H, W)
    negative = 1.0 - positive
    w_c = label * positive + (1.0 - label) * negative    # (B, B, H, W) torch-style broadcast

    sv = jnp.asarray(_SOBEL_V, jnp.float32).reshape(1, 1, 3, 3)
    sh = jnp.asarray(_SOBEL_H, jnp.float32).reshape(1, 1, 3, 3)

    def conv(x, w, pad):
        return lax.conv_general_dilated(
            x, w, (1, 1), [(pad, pad), (pad, pad)],
            dimension_numbers=('NCHW', 'OIHW', 'NCHW'))

    v = conv(label, sv, 1)
    h = conv(label, sh, 1)
    edge = ((jnp.abs(v) + jnp.abs(h)) > 0).astype(jnp.float32)
    edge = conv(edge, _gauss2d().reshape(1, 1, _KS, _KS), _PAD)
    return edge * 5.0 + w_c


if __name__ == "__main__":
    key = jax.random.PRNGKey(0)
    B, H, W = 2, 16, 16
    # binary segmentation label map, shape (batch, 1, H, W)
    label = jax.random.bernoulli(key, 0.35, (B, 1, H, W)).astype(jnp.float32)

    out = jax.block_until_ready(weight_map_forward(label))
    ref = jax.block_until_ready(reference_forward(label))

    assert out.shape == (B, B, H, W), out.shape
    max_err = float(jnp.max(jnp.abs(out - ref)))
    assert jnp.allclose(out, ref, atol=1e-4, rtol=1e-4), max_err

    print("KERNEL_OK")
</pallas_src>

<mosaic_0001>
module attributes {stable_mosaic.version = 11 : i64} {
  func.func @_weightmap_kernel(%arg0: i32, %arg1: memref<2x34x34xf32, #tpu.memory_space<vmem>>, %arg2: memref<1x2x16x16xf32, #tpu.memory_space<vmem>>) attributes {dimension_semantics = [#tpu.dimension_semantics<parallel>], iteration_bounds = array<i64: 2>, scalar_prefetch = 0 : i64, scratch_operands = 0 : i64, tpu.core_type = #tpu.core_type<tc>, window_params = [{pipeline_mode = #tpu.pipeline_mode<synchronous>, transform_indices = @transform_0, window_bounds = array<i64: 2, 34, 34>}, {transform_indices = @transform_1, window_bounds = array<i64: 1, 2, 16, 16>}]} {
    %0 = arith.index_cast %arg0 : i32 to index
    %c0 = arith.constant 0 : index
    %c0_0 = arith.constant 0 : index
    %1 = vector.load %arg1[%0, %c0, %c0_0] : memref<2x34x34xf32, #tpu.memory_space<vmem>>, vector<1x34x34xf32>
    %2 = vector.shape_cast %1 : vector<1x34x34xf32> to vector<34x34xf32>
    %cst = arith.constant 0.000000e+00 : f32
    %3 = vector.broadcast %cst : f32 to vector<32x32xf32>
    %cst_1 = arith.constant 0.000000e+00 : f32
    %4 = vector.broadcast %cst_1 : f32 to vector<32x32xf32>
    %5 = vector.extract_strided_slice %2 {offsets = [0, 0], sizes = [32, 32], strides = [1, 1]} : vector<34x34xf32> to vector<32x32xf32>
    %cst_2 = arith.constant 1.000000e+00 : f32
    %6 = vector.broadcast %cst_2 : f32 to vector<32x32xf32>
    %7 = arith.mulf %6, %5 : vector<32x32xf32>
    %8 = arith.addf %3, %7 : vector<32x32xf32>
    %cst_3 = arith.constant 1.000000e+00 : f32
    %9 = vector.broadcast %cst_3 : f32 to vector<32x32xf32>
    %10 = arith.mulf %9, %5 : vector<32x32xf32>
    %11 = arith.addf %4, %10 : vector<32x32xf32>
    %12 = vector.extract_strided_slice %2 {offsets = [0, 1], sizes = [32, 32], strides = [1, 1]} : vector<34x34xf32> to vector<32x32xf32>
    %cst_4 = arith.constant 2.000000e+00 : f32
    %13 = vector.broadcast %cst_4 : f32 to vector<32x32xf32>
    %14 = arith.mulf %13, %12 : vector<32x32xf32>
    %15 = arith.addf %8, %14 : vector<32x32xf32>
    %16 = vector.extract_strided_slice %2 {offsets = [0, 2], sizes = [32, 32], strides = [1, 1]} : vector<34x34xf32> to vector<32x32xf32>
    %cst_5 = arith.constant 1.000000e+00 : f32
    %17 = vector.broadcast %cst_5 : f32 to vector<32x32xf32>
    %18 = arith.mulf %17, %16 : vector<32x32xf32>
    %19 = arith.addf %15, %18 : vector<32x32xf32>
    %cst_6 = arith.constant -1.000000e+00 : f32
    %20 = vector.broadcast %cst_6 : f32 to vector<32x32xf32>
    %21 = arith.mulf %20, %16 : vector<32x32xf32>
    %22 = arith.addf %11, %21 : vector<32x32xf32>
    %23 = vector.extract_strided_slice %2 {offsets = [1, 0], sizes = [32, 32], strides = [1, 1]} : vector<34x34xf32> to vector<32x32xf32>
    %cst_7 = arith.constant 2.000000e+00 : f32
    %24 = vector.broadcast %cst_7 : f32 to vector<32x32xf32>
    %25 = arith.mulf %24, %23 : vector<32x32xf32>
    %26 = arith.addf %22, %25 : vector<32x32xf32>
    %27 = vector.extract_strided_slice %2 {offsets = [1, 2], sizes = [32, 32], strides = [1, 1]} : vector<34x34xf32> to vector<32x32xf32>
    %cst_8 = arith.constant -2.000000e+00 : f32
    %28 = vector.broadcast %cst_8 : f32 to vector<32x32xf32>
    %29 = arith.mulf %28, %27 : vector<32x32xf32>
    %30 = arith.addf %26, %29 : vector<32x32xf32>
    %31 = vector.extract_strided_slice %2 {offsets = [2, 0], sizes = [32, 32], strides = [1, 1]} : vector<34x34xf32> to vector<32x32xf32>
    %cst_9 = arith.constant -1.000000e+00 : f32
    %32 = vector.broadcast %cst_9 : f32 to vector<32x32xf32>
    %33 = arith.mulf %32, %31 : vector<32x32xf32>
    %34 = arith.addf %19, %33 : vector<32x32xf32>
    %cst_10 = arith.constant 1.000000e+00 : f32
    %35 = vector.broadcast %cst_10 : f32 to vector<32x32xf32>
    %36 = arith.mulf %35, %31 : vector<32x32xf32>
    %37 = arith.addf %30, %36 : vector<32x32xf32>
    %38 = vector.extract_strided_slice %2 {offsets = [2, 1], sizes = [32, 32], strides = [1, 1]} : vector<34x34xf32> to vector<32x32xf32>
    %cst_11 = arith.constant -2.000000e+00 : f32
    %39 = vector.broadcast %cst_11 : f32 to vector<32x32xf32>
    %40 = arith.mulf %39, %38 : vector<32x32xf32>
    %41 = arith.addf %34, %40 : vector<32x32xf32>
    %42 = vector.extract_strided_slice %2 {offsets = [2, 2], sizes = [32, 32], strides = [1, 1]} : vector<34x34xf32> to vector<32x32xf32>
    %cst_12 = arith.constant 1.000000e+00 : f32
    %43 = vector.broadcast %cst_12 : f32 to vector<32x32xf32>
    %44 = arith.mulf %43, %42 : vector<32x32xf32>
    %45 = arith.addf %41, %44 : vector<32x32xf32>
    %cst_13 = arith.constant -1.000000e+00 : f32
    %46 = vector.broadcast %cst_13 : f32 to vector<32x32xf32>
    %47 = arith.mulf %46, %42 : vector<32x32xf32>
    %48 = arith.addf %37, %47 : vector<32x32xf32>
    %49 = math.absf %45 : vector<32x32xf32>
    %50 = math.absf %48 : vector<32x32xf32>
    %51 = arith.addf %49, %50 : vector<32x32xf32>
    %cst_14 = arith.constant 0.000000e+00 : f32
    %52 = vector.broadcast %cst_14 : f32 to vector<32x32xf32>
    %53 = arith.cmpf ogt, %51, %52 : vector<32x32xf32>
    %54 = arith.extui %53 : vector<32x32xi1> to vector<32x32xi32>
    %55 = arith.sitofp %54 : vector<32x32xi32> to vector<32x32xf32>
    %56 = tpu.iota {dimensions = array<i32: 0>} : vector<32x32xi32>
    %57 = tpu.iota {dimensions = array<i32: 1>} : vector<32x32xi32>
    %c8_i32 = arith.constant 8 : i32
    %58 = vector.broadcast %c8_i32 : i32 to vector<32x32xi32>
    %59 = arith.cmpi sge, %56, %58 : vector<32x32xi32>
    %c24_i32 = arith.constant 24 : i32
    %60 = vector.broadcast %c24_i32 : i32 to vector<32x32xi32>
    %61 = arith.cmpi slt, %56, %60 : vector<32x32xi32>
    %62 = arith.andi %59, %61 : vector<32x32xi1>
    %c8_i32_15 = arith.constant 8 : i32
    %63 = vector.broadcast %c8_i32_15 : i32 to vector<32x32xi32>
    %64 = arith.cmpi sge, %57, %63 : vector<32x32xi32>
    %65 = arith.andi %62, %64 : vector<32x32xi1>
    %c24_i32_16 = arith.constant 24 : i32
    %66 = vector.broadcast %c24_i32_16 : i32 to vector<32x32xi32>
    %67 = arith.cmpi slt, %57, %66 : vector<32x32xi32>
    %68 = arith.andi %65, %67 : vector<32x32xi1>
    %cst_17 = arith.constant 0.000000e+00 : f32
    %69 = vector.broadcast %cst_17 : f32 to vector<32x32xf32>
    %70 = arith.select %68, %55, %69 : vector<32x32xi1>, vector<32x32xf32>
    %cst_18 = arith.constant 0.000000e+00 : f32
    %71 = vector.broadcast %cst_18 : f32 to vector<32x16xf32>
    %72 = vector.extract_strided_slice %70 {offsets = [0, 0], sizes = [32, 16], strides = [1, 1]} : vector<32x32xf32> to vector<32x16xf32>
    %cst_19 = arith.constant 0.0243407022 : f32
    %73 = vector.broadcast %cst_19 : f32 to vector<32x16xf32>
    %74 = arith.mulf %73, %72 : vector<32x16xf32>
    %75 = arith.addf %71, %74 : vector<32x16xf32>
    %76 = vector.extract_strided_slice %70 {offsets = [0, 1], sizes = [32, 16], strides = [1, 1]} : vector<32x32xf32> to vector<32x16xf32>
    %cst_20 = arith.constant 0.0328565128 : f32
    %77 = vector.broadcast %cst_20 : f32 to vector<32x16xf32>
    %78 = arith.mulf %77, %76 : vector<32x16xf32>
    %79 = arith.addf %75, %78 : vector<32x16xf32>
    %80 = vector.extract_strided_slice %70 {offsets = [0, 2], sizes = [32, 16], strides = [1, 1]} : vector<32x32xf32> to vector<32x16xf32>
    %cst_21 = arith.constant 0.0426125973 : f32
    %81 = vector.broadcast %cst_21 : f32 to vector<32x16xf32>
    %82 = arith.mulf %81, %80 : vector<32x16xf32>
    %83 = arith.addf %79, %82 : vector<32x16xf32>
    %84 = vector.extract_strided_slice %70 {offsets = [0, 3], sizes = [32, 16], strides = [1, 1]} : vector<32x32xf32> to vector<32x16xf32>
    %cst_22 = arith.constant 0.0530985668 : f32
    %85 = vector.broadcast %cst_22 : f32 to vector<32x16xf32>
    %86 = arith.mulf %85, %84 : vector<32x16xf32>
    %87 = arith.addf %83, %86 : vector<32x16xf32>
    %88 = vector.extract_strided_slice %70 {offsets = [0, 4], sizes = [32, 16], strides = [1, 1]} : vector<32x32xf32> to vector<32x16xf32>
    %cst_23 = arith.constant 0.0635705292 : f32
    %89 = vector.broadcast %cst_23 : f32 to vector<32x16xf32>
    %90 = arith.mulf %89, %88 : vector<32x16xf32>
    %91 = arith.addf %87, %90 : vector<32x16xf32>
    %92 = vector.extract_strided_slice %70 {offsets = [0, 5], sizes = [32, 16], strides = [1, 1]} : vector<32x32xf32> to vector<32x16xf32>
    %cst_24 = arith.constant 0.0731235147 : f32
    %93 = vector.broadcast %cst_24 : f32 to vector<32x16xf32>
    %94 = arith.mulf %93, %92 : vector<32x16xf32>
    %95 = arith.addf %91, %94 : vector<32x16xf32>
    %96 = vector.extract_strided_slice %70 {offsets = [0, 6], sizes = [32, 16], strides = [1, 1]} : vector<32x32xf32> to vector<32x16xf32>
    %cst_25 = arith.constant 0.0808139815 : f32
    %97 = vector.broadcast %cst_25 : f32 to vector<32x16xf32>
    %98 = arith.mulf %97, %96 : vector<32x16xf32>
    %99 = arith.addf %95, %98 : vector<32x16xf32>
    %100 = vector.extract_strided_slice %70 {offsets = [0, 7], sizes = [32, 16], strides = [1, 1]} : vector<32x32xf32> to vector<32x16xf32>
    %cst_26 = arith.constant 0.085811235 : f32
    %101 = vector.broadcast %cst_26 : f32 to vector<32x16xf32>
    %102 = arith.mulf %101, %100 : vector<32x16xf32>
    %103 = arith.addf %99, %102 : vector<32x16xf32>
    %104 = vector.extract_strided_slice %70 {offsets = [0, 8], sizes = [32, 16], strides = [1, 1]} : vector<32x32xf32> to vector<32x16xf32>
    %cst_27 = arith.constant 0.0875447392 : f32
    %105 = vector.broadcast %cst_27 : f32 to vector<32x16xf32>
    %106 = arith.mulf %105, %104 : vector<32x16xf32>
    %107 = arith.addf %103, %106 : vector<32x16xf32>
    %108 = vector.extract_strided_slice %70 {offsets = [0, 9], sizes = [32, 16], strides = [1, 1]} : vector<32x32xf32> to vector<32x16xf32>
    %cst_28 = arith.constant 0.085811235 : f32
    %109 = vector.broadcast %cst_28 : f32 to vector<32x16xf32>
    %110 = arith.mulf %109, %108 : vector<32x16xf32>
    %111 = arith.addf %107, %110 : vector<32x16xf32>
    %112 = vector.extract_strided_slice %70 {offsets = [0, 10], sizes = [32, 16], strides = [1, 1]} : vector<32x32xf32> to vector<32x16xf32>
    %cst_29 = arith.constant 0.0808139815 : f32
    %113 = vector.broadcast %cst_29 : f32 to vector<32x16xf32>
    %114 = arith.mulf %113, %112 : vector<32x16xf32>
    %115 = arith.addf %111, %114 : vector<32x16xf32>
    %116 = vector.extract_strided_slice %70 {offsets = [0, 11], sizes = [32, 16], strides = [1, 1]} : vector<32x32xf32> to vector<32x16xf32>
    %cst_30 = arith.constant 0.0731235147 : f32
    %117 = vector.broadcast %cst_30 : f32 to vector<32x16xf32>
    %118 = arith.mulf %117, %116 : vector<32x16xf32>
    %119 = arith.addf %115, %118 : vector<32x16xf32>
    %120 = vector.extract_strided_slice %70 {offsets = [0, 12], sizes = [32, 16], strides = [1, 1]} : vector<32x32xf32> to vector<32x16xf32>
    %cst_31 = arith.constant 0.0635705292 : f32
    %121 = vector.broadcast %cst_31 : f32 to vector<32x16xf32>
    %122 = arith.mulf %121, %120 : vector<32x16xf32>
    %123 = arith.addf %119, %122 : vector<32x16xf32>
    %124 = vector.extract_strided_slice %70 {offsets = [0, 13], sizes = [32, 16], strides = [1, 1]} : vector<32x32xf32> to vector<32x16xf32>
    %cst_32 = arith.constant 0.0530985668 : f32
    %125 = vector.broadcast %cst_32 : f32 to vector<32x16xf32>
    %126 = arith.mulf %125, %124 : vector<32x16xf32>
    %127 = arith.addf %123, %126 : vector<32x16xf32>
    %128 = vector.extract_strided_slice %70 {offsets = [0, 14], sizes = [32, 16], strides = [1, 1]} : vector<32x32xf32> to vector<32x16xf32>
    %cst_33 = arith.constant 0.0426125973 : f32
    %129 = vector.broadcast %cst_33 : f32 to vector<32x16xf32>
    %130 = arith.mulf %129, %128 : vector<32x16xf32>
    %131 = arith.addf %127, %130 : vector<32x16xf32>
    %132 = vector.extract_strided_slice %70 {offsets = [0, 15], sizes = [32, 16], strides = [1, 1]} : vector<32x32xf32> to vector<32x16xf32>
    %cst_34 = arith.constant 0.0328565128 : f32
    %133 = vector.broadcast %cst_34 : f32 to vector<32x16xf32>
    %134 = arith.mulf %133, %132 : vector<32x16xf32>
    %135 = arith.addf %131, %134 : vector<32x16xf32>
    %136 = vector.extract_strided_slice %70 {offsets = [0, 16], sizes = [32, 16], strides = [1, 1]} : vector<32x32xf32> to vector<32x16xf32>
    %cst_35 = arith.constant 0.0243407022 : f32
    %137 = vector.broadcast %cst_35 : f32 to vector<32x16xf32>
    %138 = arith.mulf %137, %136 : vector<32x16xf32>
    %139 = arith.addf %135, %138 : vector<32x16xf32>
    %cst_36 = arith.constant 0.000000e+00 : f32
    %140 = vector.broadcast %cst_36 : f32 to vector<16x16xf32>
    %141 = vector.extract_strided_slice %139 {offsets = [0, 0], sizes = [16, 16], strides = [1, 1]} : vector<32x16xf32> to vector<16x16xf32>
    %cst_37 = arith.constant 0.0243407022 : f32
    %142 = vector.broadcast %cst_37 : f32 to vector<16x16xf32>
    %143 = arith.mulf %142, %141 : vector<16x16xf32>
    %144 = arith.addf %140, %143 : vector<16x16xf32>
    %145 = vector.extract_strided_slice %139 {offsets = [1, 0], sizes = [16, 16], strides = [1, 1]} : vector<32x16xf32> to vector<16x16xf32>
    %cst_38 = arith.constant 0.0328565128 : f32
    %146 = vector.broadcast %cst_38 : f32 to vector<16x16xf32>
    %147 = arith.mulf %146, %145 : vector<16x16xf32>
    %148 = arith.addf %144, %147 : vector<16x16xf32>
    %149 = vector.extract_strided_slice %139 {offsets = [2, 0], sizes = [16, 16], strides = [1, 1]} : vector<32x16xf32> to vector<16x16xf32>
    %cst_39 = arith.constant 0.0426125973 : f32
    %150 = vector.broadcast %cst_39 : f32 to vector<16x16xf32>
    %151 = arith.mulf %150, %149 : vector<16x16xf32>
    %152 = arith.addf %148, %151 : vector<16x16xf32>
    %153 = vector.extract_strided_slice %139 {offsets = [3, 0], sizes = [16, 16], strides = [1, 1]} : vector<32x16xf32> to vector<16x16xf32>
    %cst_40 = arith.constant 0.0530985668 : f32
    %154 = vector.broadcast %cst_40 : f32 to vector<16x16xf32>
    %155 = arith.mulf %154, %153 : vector<16x16xf32>
    %156 = arith.addf %152, %155 : vector<16x16xf32>
    %157 = vector.extract_strided_slice %139 {offsets = [4, 0], sizes = [16, 16], strides = [1, 1]} : vector<32x16xf32> to vector<16x16xf32>
    %cst_41 = arith.constant 0.0635705292 : f32
    %158 = vector.broadcast %cst_41 : f32 to vector<16x16xf32>
    %159 = arith.mulf %158, %157 : vector<16x16xf32>
    %160 = arith.addf %156, %159 : vector<16x16xf32>
    %161 = vector.extract_strided_slice %139 {offsets = [5, 0], sizes = [16, 16], strides = [1, 1]} : vector<32x16xf32> to vector<16x16xf32>
    %cst_42 = arith.constant 0.0731235147 : f32
    %162 = vector.broadcast %cst_42 : f32 to vector<16x16xf32>
    %163 = arith.mulf %162, %161 : vector<16x16xf32>
    %164 = arith.addf %160, %163 : vector<16x16xf32>
    %165 = vector.extract_strided_slice %139 {offsets = [6, 0], sizes = [16, 16], strides = [1, 1]} : vector<32x16xf32> to vector<16x16xf32>
    %cst_43 = arith.constant 0.0808139815 : f32
    %166 = vector.broadcast %cst_43 : f32 to vector<16x16xf32>
    %167 = arith.mulf %166, %165 : vector<16x16xf32>
    %168 = arith.addf %164, %167 : vector<16x16xf32>
    %169 = vector.extract_strided_slice %139 {offsets = [7, 0], sizes = [16, 16], strides = [1, 1]} : vector<32x16xf32> to vector<16x16xf32>
    %cst_44 = arith.constant 0.085811235 : f32
    %170 = vector.broadcast %cst_44 : f32 to vector<16x16xf32>
    %171 = arith.mulf %170, %169 : vector<16x16xf32>
    %172 = arith.addf %168, %171 : vector<16x16xf32>
    %173 = vector.extract_strided_slice %139 {offsets = [8, 0], sizes = [16, 16], strides = [1, 1]} : vector<32x16xf32> to vector<16x16xf32>
    %cst_45 = arith.constant 0.0875447392 : f32
    %174 = vector.broadcast %cst_45 : f32 to vector<16x16xf32>
    %175 = arith.mulf %174, %173 : vector<16x16xf32>
    %176 = arith.addf %172, %175 : vector<16x16xf32>
    %177 = vector.extract_strided_slice %139 {offsets = [9, 0], sizes = [16, 16], strides = [1, 1]} : vector<32x16xf32> to vector<16x16xf32>
    %cst_46 = arith.constant 0.085811235 : f32
    %178 = vector.broadcast %cst_46 : f32 to vector<16x16xf32>
    %179 = arith.mulf %178, %177 : vector<16x16xf32>
    %180 = arith.addf %176, %179 : vector<16x16xf32>
    %181 = vector.extract_strided_slice %139 {offsets = [10, 0], sizes = [16, 16], strides = [1, 1]} : vector<32x16xf32> to vector<16x16xf32>
    %cst_47 = arith.constant 0.0808139815 : f32
    %182 = vector.broadcast %cst_47 : f32 to vector<16x16xf32>
    %183 = arith.mulf %182, %181 : vector<16x16xf32>
    %184 = arith.addf %180, %183 : vector<16x16xf32>
    %185 = vector.extract_strided_slice %139 {offsets = [11, 0], sizes = [16, 16], strides = [1, 1]} : vector<32x16xf32> to vector<16x16xf32>
    %cst_48 = arith.constant 0.0731235147 : f32
    %186 = vector.broadcast %cst_48 : f32 to vector<16x16xf32>
    %187 = arith.mulf %186, %185 : vector<16x16xf32>
    %188 = arith.addf %184, %187 : vector<16x16xf32>
    %189 = vector.extract_strided_slice %139 {offsets = [12, 0], sizes = [16, 16], strides = [1, 1]} : vector<32x16xf32> to vector<16x16xf32>
    %cst_49 = arith.constant 0.0635705292 : f32
    %190 = vector.broadcast %cst_49 : f32 to vector<16x16xf32>
    %191 = arith.mulf %190, %189 : vector<16x16xf32>
    %192 = arith.addf %188, %191 : vector<16x16xf32>
    %193 = vector.extract_strided_slice %139 {offsets = [13, 0], sizes = [16, 16], strides = [1, 1]} : vector<32x16xf32> to vector<16x16xf32>
    %cst_50 = arith.constant 0.0530985668 : f32
    %194 = vector.broadcast %cst_50 : f32 to vector<16x16xf32>
    %195 = arith.mulf %194, %193 : vector<16x16xf32>
    %196 = arith.addf %192, %195 : vector<16x16xf32>
    %197 = vector.extract_strided_slice %139 {offsets = [14, 0], sizes = [16, 16], strides = [1, 1]} : vector<32x16xf32> to vector<16x16xf32>
    %cst_51 = arith.constant 0.0426125973 : f32
    %198 = vector.broadcast %cst_51 : f32 to vector<16x16xf32>
    %199 = arith.mulf %198, %197 : vector<16x16xf32>
    %200 = arith.addf %196, %199 : vector<16x16xf32>
    %201 = vector.extract_strided_slice %139 {offsets = [15, 0], sizes = [16, 16], strides = [1, 1]} : vector<32x16xf32> to vector<16x16xf32>
    %cst_52 = arith.constant 0.0328565128 : f32
    %202 = vector.broadcast %cst_52 : f32 to vector<16x16xf32>
    %203 = arith.mulf %202, %201 : vector<16x16xf32>
    %204 = arith.addf %200, %203 : vector<16x16xf32>
    %205 = vector.extract_strided_slice %139 {offsets = [16, 0], sizes = [16, 16], strides = [1, 1]} : vector<32x16xf32> to vector<16x16xf32>
    %cst_53 = arith.constant 0.0243407022 : f32
    %206 = vector.broadcast %cst_53 : f32 to vector<16x16xf32>
    %207 = arith.mulf %206, %205 : vector<16x16xf32>
    %208 = arith.addf %204, %207 : vector<16x16xf32>
    %209 = vector.extract_strided_slice %2 {offsets = [9, 9], sizes = [16, 16], strides = [1, 1]} : vector<34x34xf32> to vector<16x16xf32>
    %c0_54 = arith.constant 0 : index
    %c0_55 = arith.constant 0 : index
    %c0_56 = arith.constant 0 : index
    %210 = vector.load %arg1[%c0_54, %c0_55, %c0_56] : memref<2x34x34xf32, #tpu.memory_space<vmem>>, vector<2x34x34xf32>
    %211 = vector.extract_strided_slice %210 {offsets = [0, 9, 9], sizes = [2, 16, 16], strides = [1, 1, 1]} : vector<2x34x34xf32> to vector<2x16x16xf32>
    %cst_57 = arith.constant 3.906250e-03 : f32
    %212 = vector.broadcast %cst_57 : f32 to vector<2x16x16xf32>
    %213 = arith.mulf %211, %212 : vector<2x16x16xf32>
    %214 = vector.shape_cast %209 : vector<16x16xf32> to vector<1x16x16xf32>
    %215 = vector.broadcast %214 : vector<1x16x16xf32> to vector<2x16x16xf32>
    %216 = arith.mulf %215, %213 : vector<2x16x16xf32>
    %217 = vector.shape_cast %209 : vector<16x16xf32> to vector<1x16x16xf32>
    %cst_58 = arith.constant 1.000000e+00 : f32
    %218 = vector.broadcast %cst_58 : f32 to vector<1x16x16xf32>
    %219 = arith.subf %218, %217 : vector<1x16x16xf32>
    %cst_59 = arith.constant 1.000000e+00 : f32
    %220 = vector.broadcast %cst_59 : f32 to vector<2x16x16xf32>
    %221 = arith.subf %220, %213 : vector<2x16x16xf32>
    %222 = vector.broadcast %219 : vector<1x16x16xf32> to vector<2x16x16xf32>
    %223 = arith.mulf %222, %221 : vector<2x16x16xf32>
    %224 = arith.addf %216, %223 : vector<2x16x16xf32>
    %225 = vector.shape_cast %208 : vector<16x16xf32> to vector<1x16x16xf32>
    %cst_60 = arith.constant 5.000000e+00 : f32
    %226 = vector.broadcast %cst_60 : f32 to vector<1x16x16xf32>
    %227 = arith.mulf %226, %225 : vector<1x16x16xf32>
    %228 = vector.broadcast %227 : vector<1x16x16xf32> to vector<2x16x16xf32>
    %229 = arith.addf %228, %224 : vector<2x16x16xf32>
    %c0_61 = arith.constant 0 : index
    %c0_62 = arith.constant 0 : index
    %c0_63 = arith.constant 0 : index
    %c0_64 = arith.constant 0 : index
    %230 = vector.load %arg2[%c0_61, %c0_62, %c0_63, %c0_64] : memref<1x2x16x16xf32, #tpu.memory_space<vmem>>, vector<1x2x16x16xf32>
    %231 = vector.shape_cast %230 : vector<1x2x16x16xf32> to vector<2x16x16xf32>
    %232 = vector.shape_cast %229 : vector<2x16x16xf32> to vector<1x2x16x16xf32>
    tpu.vector_store %arg2[%c0_61, %c0_62, %c0_63, %c0_64], %232 {strides = array<i32>} : memref<1x2x16x16xf32, #tpu.memory_space<vmem>>, vector<1x2x16x16xf32>,
    return
  }
  func.func @transform_0(%arg0: i32) -> (i32, i32, i32) {
    %c0_i32 = arith.constant 0 : i32
    %c0_i32_0 = arith.constant 0 : i32
    %c0_i32_1 = arith.constant 0 : i32
    %c0_i32_2 = arith.constant 0 : i32
    return %c0_i32, %c0_i32_0, %c0_i32_1 : i32, i32, i32
  }
  func.func @transform_1(%arg0: i32) -> (i32, i32, i32, i32) {
    %c0_i32 = arith.constant 0 : i32
    %c0_i32_0 = arith.constant 0 : i32
    %c0_i32_1 = arith.constant 0 : i32
    %c0_i32_2 = arith.constant 0 : i32
    return %arg0, %c0_i32, %c0_i32_0, %c0_i32_1 : i32, i32, i32, i32
  }
}

</mosaic_0001>

<llo_original>
// kernel: weight_map_forward.1
$region0: #{weight_map_forward.1}
  #allocation0 [shape = 'u32[]', space=smem, size = 0x4, offset = 0x4, fixed_abs, tag = 'smem constant byte address 0x4 - core index']
  #allocation1 [shape = 'u32[72,128]{1,0:T(1,128)}', space=vmem, size = 0x9000, scoped, tag = 'internal scratch']
  %s0 = inlined_call_operand.vmem [shape: f32[2,34,34], index: 0, kind: input, shape index: {}]
  %s1 = inlined_call_operand.hbm [shape: f32[2,2,16,16], index: 1, kind: output, shape index: {}]
  %s2 = sld [smem:[#allocation0]]
  $region37: #{weight_map_forward.1} parent=0
    _
  %s4 = ssub.s32 1, %s2
  %s5 = scalar_select 0, %s4, %s2
  $region1: #{weight_map_forward.1} parent=0
    #allocation2 [shape = 'u8[32768]{0}', space=vmem, size = 0x8000, scoped, tag = 'output window, operand 0']
    #allocation3 [shape = 's32[2]{0}', space=sflag, size = 0x8, scoped, tag = 'scoped memory for weight_map_forward.1']
    %6 = vsyncpa [#allocation3], 0
    %s7 = scalar_lea.sflag [#allocation3], 1
    %8 = vsyncpa %s7, 0
    loop: start=0, step=1, limit=4
    $region2: #{weight_map_forward.1} parent=1 // loop_pre_header
      _
    $region3: #{weight_map_forward.1} parent=1 // loop_header
      %s10 = sphi 0, %s14
      %p11 = scmp.ge.s32.totalorder %s10, 4
      %s18 = sphi 0, %s18
      %s20 = sphi 0, %s18
      %s21 = sphi 0, %s20
      %s35 = sphi 0, %s21
      %s41 = sphi 0, %s43
      %s44 = sphi 0, %s41
      %s45 = sphi 0, %s44
      %s61 = sphi 0, %s45
    $region4: #{weight_map_forward.1} parent=1 // loop_header_branch
      %13 = sbr.rel (%p11) target = $region8
    $region5: #{weight_map_forward.1} parent=1 // loop_body
      %s15 = ssub.s32 %s10, 1
      %s16 = ssub.s32 %s10, 2
      %s17 = sadd.s32 %s10, 1
      %s19 = sadd.s32 %s18, 1
      %p22 = scmp.eq.s32.totalorder %s10, 1
      %p23 = scmp.ne.s32.totalorder %s18, %s20
      %p24 = scmp.eq.s32.totalorder %s10, 0
      %p25 = por %p23, %p24
      %p26 = scmp.ne.s32.totalorder %s18, %s20
      %p27 = scmp.eq.s32.totalorder %s15, 1
      %p28 = por %p26, %p27
      %p29 = scmp.ne.s32.totalorder %s20, %s21
      %p30 = scmp.eq.s32.totalorder %s15, 0
      %p31 = por %p29, %p30
      %p32 = scmp.ne.s32.totalorder %s20, %s21
      %p33 = scmp.eq.s32.totalorder %s16, 1
      %p34 = por %p32, %p33
      %p36 = scmp.ne.s32.totalorder %s21, %s35
      %p37 = scmp.eq.s32.totalorder %s16, 0
      %p38 = por %p36, %p37
      %s39 = ssub.s32 %s10, %s17
      %p40 = scmp.eq.s32.totalorder %s39, 0
      %s42 = sadd.s32 %s41, 1
      %s43 = scalar_select %p40, %s41, %s42
      %p46 = pneg %p40
      %p47 = scmp.eq.s32.totalorder %s10, 1
      %p48 = por %p46, %p47
      %p49 = scmp.ne.s32.totalorder %s41, %s44
      %p50 = scmp.eq.s32.totalorder %s10, 0
      %p51 = por %p49, %p50
      %p52 = scmp.ne.s32.totalorder %s41, %s44
      %p53 = scmp.eq.s32.totalorder %s15, 1
      %p54 = por %p52, %p53
      %p55 = scmp.ne.s32.totalorder %s44, %s45
      %p56 = scmp.eq.s32.totalorder %s15, 0
      %p57 = por %p55, %p56
      %p58 = scmp.ne.s32.totalorder %s44, %s45
      %p59 = scmp.eq.s32.totalorder %s16, 1
      %p60 = por %p58, %p59
      %p62 = scmp.ne.s32.totalorder %s45, %s61
      %p63 = scmp.eq.s32.totalorder %s16, 0
      %p64 = por %p62, %p63
      %p65 = scmp.le.s32.totalorder 1, %s10
      %p66 = scmp.lt.s32.totalorder %s10, 3
      %p67 = pnand %p65, %p66
      %p68 = pneg %p67
      // Predicated region
      $region9: #{weight_map_forward.1} parent=5 // pred_check
        _
      $region10: #{weight_map_forward.1} parent=5 // pred_check_branch
        %70 = sbr.rel (%p67) target = $region12
      $region11: #{weight_map_forward.1} parent=5 // pred_region
        %s71 = ssub.s32 %s10, 1
        // Predicated region
        $region13: #{weight_map_forward.1} parent=11 // pred_check
          %p72 = pneg %p31
        $region14: #{weight_map_forward.1} parent=11 // pred_check_branch
          %74 = sbr.rel (%p72) target = $region16
        $region15: #{weight_map_forward.1} parent=11 // pred_region
          _
        $region16: #{weight_map_forward.1} parent=11 // pred_fallthru
          _
      $region12: #{weight_map_forward.1} parent=5 // pred_fallthru
        _
      %p75 = scmp.lt.s32.totalorder %s10, 2
      // Predicated region
      $region17: #{weight_map_forward.1} parent=5 // pred_check
        %p76 = pneg %p75
      $region18: #{weight_map_forward.1} parent=5 // pred_check_branch
        %78 = sbr.rel (%p76) target = $region20
      $region19: #{weight_map_forward.1} parent=5 // pred_region
        _
      $region20: #{weight_map_forward.1} parent=5 // pred_fallthru
        _
      %p79 = scmp.le.s32.totalorder 1, %s10
      %p80 = scmp.lt.s32.totalorder %s10, 3
      %p81 = pnand %p79, %p80
      %p82 = pneg %p81
      // Predicated region
      $region21: #{weight_map_forward.1} parent=5 // pred_check
        _
      $region22: #{weight_map_forward.1} parent=5 // pred_check_branch
        %84 = sbr.rel (%p81) target = $region24
      $region23: #{weight_map_forward.1} parent=5 // pred_region
        %s85 = ssub.s32 %s10, 1
        %p86 = pneg %p31
        %p87 = pneg %p28
        %p88 = pneg %p57
        %p89 = pneg %p54
        %s90 = sand.u32 %s44, 1
        %s91 = scalar_lea.sflag [#allocation3], %s90
        %s92 = sand.u32 %s44, 1
        %s93 = smul.addr %s92, 32
        %s94 = scalar_lea.vmem [#allocation2], %s93
        %s95 = smul.u32 %s15, 40
        %s96 = scalar_lea.vmem %s0, %s95
        %v97 = vld [vmem:[%s96] sm:$0xff]
        %v98 = vld [vmem:[%s96 + $0x8] sm:$0xff]
        %v99 = vld [vmem:[%s96 + $0x10] sm:$0xff]
        %v100 = vld [vmem:[%s96 + $0x18] sm:$0xff]
        %v101 = vld [vmem:[%s96 + $0x20] sm:$0x3]
        %v102 = vadd.f32 %v97, 0.0
        %v103 = vadd.f32 %v98, 0.0
        %v104 = vadd.f32 %v99, 0.0
        %v105 = vadd.f32 %v100, 0.0
        %v106 = vmul.f32 %v97, 2.0
        %v107 = vmul.f32 %v98, 2.0
        %v108 = vmul.f32 %v99, 2.0
        %v109 = vmul.f32 %v100, 2.0
        %114 = vrot.lane.b32.xlu0 %v106, 127
        %v115 = vpop.permute.xlu0 %114
        %116 = vrot.lane.b32.xlu0 %v107, 127
        %v117 = vpop.permute.xlu0 %116
        %118 = vrot.lane.b32.xlu0 %v108, 127
        %v119 = vpop.permute.xlu0 %118
        %120 = vrot.lane.b32.xlu0 %v109, 127
        %v121 = vpop.permute.xlu0 %120
        %v126 = vadd.f32 %v102, %v115
        %v127 = vadd.f32 %v103, %v117
        %v128 = vadd.f32 %v104, %v119
        %v129 = vadd.f32 %v105, %v121
        %134 = vrot.lane.b32.xlu0 %v97, 126
        %v135 = vpop.permute.xlu0 %134
        %136 = vrot.lane.b32.xlu0 %v98, 126
        %v137 = vpop.permute.xlu0 %136
        %138 = vrot.lane.b32.xlu0 %v99, 126
        %v139 = vpop.permute.xlu0 %138
        %140 = vrot.lane.b32.xlu0 %v100, 126
        %v141 = vpop.permute.xlu0 %140
        %v146 = vadd.f32 %v126, %v135
        %v147 = vadd.f32 %v127, %v137
        %v148 = vadd.f32 %v128, %v139
        %v149 = vadd.f32 %v129, %v141
        %v150 = vmul.f32 %v97, -1.0
        %v151 = vmul.f32 %v98, -1.0
        %v152 = vmul.f32 %v99, -1.0
        %v153 = vmul.f32 %v100, -1.0
        %158 = vrot.lane.b32.xlu0 %v150, 126
        %v159 = vpop.permute.xlu0 %158
        %160 = vrot.lane.b32.xlu0 %v151, 126
        %v161 = vpop.permute.xlu0 %160
        %162 = vrot.lane.b32.xlu0 %v152, 126
        %v163 = vpop.permute.xlu0 %162
        %164 = vrot.lane.b32.xlu0 %v153, 126
        %v165 = vpop.permute.xlu0 %164
        %v170 = vadd.f32 %v102, %v159
        %v171 = vadd.f32 %v103, %v161
        %v172 = vadd.f32 %v104, %v163
        %v173 = vadd.f32 %v105, %v165
        %v174 = vmul.f32 %v101, 2.0
        %vm176 = vcmask 1046528
        %v177 = vrot.slane %v106, 1
        %v178 = vrot.slane %v107, 1
        %v179 = vsel %vm176, %v177, %v178
        %v180 = vrot.slane %v108, 1
        %v181 = vsel %vm176, %v178, %v180
        %v182 = vrot.slane %v109, 1
        %v183 = vsel %vm176, %v180, %v182
        %v184 = vrot.slane %v174, 1
        %v185 = vsel %vm176, %v182, %v184
        %v190 = vadd.f32 %v170, %v179
        %v191 = vadd.f32 %v171, %v181
        %v192 = vadd.f32 %v172, %v183
        %v193 = vadd.f32 %v173, %v185
        %v194 = vmul.f32 %v97, -2.0
        %v195 = vmul.f32 %v98, -2.0
        %v196 = vmul.f32 %v99, -2.0
        %v197 = vmul.f32 %v100, -2.0
        %v198 = vmul.f32 %v101, -2.0
        %v204 = vrot.slane %v194, 1
        %v205 = vrot.slane %v195, 1
        %v206 = vsel %vm176, %v204, %v205
        %v207 = vrot.slane %v196, 1
        %v208 = vsel %vm176, %v205, %v207
        %v209 = vrot.slane %v197, 1
        %v210 = vsel %vm176, %v207, %v209
        %v211 = vrot.slane %v198, 1
        %v212 = vsel %vm176, %v209, %v211
        %213 = vrot.lane.b32.xlu0 %v206, 126
        %v214 = vpop.permute.xlu0 %213
        %215 = vrot.lane.b32.xlu0 %v208, 126
        %v216 = vpop.permute.xlu0 %215
        %217 = vrot.lane.b32.xlu0 %v210, 126
        %v218 = vpop.permute.xlu0 %217
        %219 = vrot.lane.b32.xlu0 %v212, 126
        %v220 = vpop.permute.xlu0 %219
        %v225 = vadd.f32 %v190, %v214
        %v226 = vadd.f32 %v191, %v216
        %v227 = vadd.f32 %v192, %v218
        %v228 = vadd.f32 %v193, %v220
        %v229 = vmul.f32 %v101, -1.0
        %vm231 = vcmask 1045504
        %v232 = vrot.slane %v150, 2
        %v233 = vrot.slane %v151, 2
        %v234 = vsel %vm231, %v232, %v233
        %v235 = vrot.slane %v152, 2
        %v236 = vsel %vm231, %v233, %v235
        %v237 = vrot.slane %v153, 2
        %v238 = vsel %vm231, %v235, %v237
        %v239 = vrot.slane %v229, 2
        %v240 = vsel %vm231, %v237, %v239
        %v245 = vadd.f32 %v146, %v234
        %v246 = vadd.f32 %v147, %v236
        %v247 = vadd.f32 %v148, %v238
        %v248 = vadd.f32 %v149, %v240
        %v250 = vrot.slane %v97, 2
        %v251 = vrot.slane %v98, 2
        %v252 = vsel %vm231, %v250, %v251
        %v253 = vrot.slane %v99, 2
        %v254 = vsel %vm231, %v251, %v253
        %v255 = vrot.slane %v100, 2
        %v256 = vsel %vm231, %v253, %v255
        %v257 = vrot.slane %v101, 2
        %v258 = vsel %vm231, %v255, %v257
        %v263 = vadd.f32 %v225, %v252
        %v264 = vadd.f32 %v226, %v254
        %v265 = vadd.f32 %v227, %v256
        %v266 = vadd.f32 %v228, %v258
        %v267 = vrot.slane %v194, 2
        %v268 = vrot.slane %v195, 2
        %v269 = vsel %vm231, %v267, %v268
        %v270 = vrot.slane %v196, 2
        %v271 = vsel %vm231, %v268, %v270
        %v272 = vrot.slane %v197, 2
        %v273 = vsel %vm231, %v270, %v272
        %v274 = vrot.slane %v198, 2
        %v275 = vsel %vm231, %v272, %v274
        %276 = vrot.lane.b32.xlu0 %v269, 127
        %v277 = vpop.permute.xlu0 %276
        %278 = vrot.lane.b32.xlu0 %v271, 127
        %v279 = vpop.permute.xlu0 %278
        %280 = vrot.lane.b32.xlu0 %v273, 127
        %v281 = vpop.permute.xlu0 %280
        %282 = vrot.lane.b32.xlu0 %v275, 127
        %v283 = vpop.permute.xlu0 %282
        %v288 = vadd.f32 %v245, %v277
        %v289 = vadd.f32 %v246, %v279
        %v290 = vadd.f32 %v247, %v281
        %v291 = vadd.f32 %v248, %v283
        %292 = vrot.lane.b32.xlu0 %v252, 126
        %v293 = vpop.permute.xlu0 %292
        %294 = vrot.lane.b32.xlu0 %v254, 126
        %v295 = vpop.permute.xlu0 %294
        %296 = vrot.lane.b32.xlu0 %v256, 126
        %v297 = vpop.permute.xlu0 %296
        %298 = vrot.lane.b32.xlu0 %v258, 126
        %v299 = vpop.permute.xlu0 %298
        %v304 = vadd.f32 %v288, %v293
        %v305 = vadd.f32 %v289, %v295
        %v306 = vadd.f32 %v290, %v297
        %v307 = vadd.f32 %v291, %v299
        %308 = vrot.lane.b32.xlu0 %v234, 126
        %v309 = vpop.permute.xlu0 %308
        %310 = vrot.lane.b32.xlu0 %v236, 126
        %v311 = vpop.permute.xlu0 %310
        %312 = vrot.lane.b32.xlu0 %v238, 126
        %v313 = vpop.permute.xlu0 %312
        %314 = vrot.lane.b32.xlu0 %v240, 126
        %v315 = vpop.permute.xlu0 %314
        %v320 = vadd.f32 %v263, %v309
        %v321 = vadd.f32 %v264, %v311
        %v322 = vadd.f32 %v265, %v313
        %v323 = vadd.f32 %v266, %v315
        %v324 = vand.u32 2147483647, %v304
        %v325 = vand.u32 2147483647, %v305
        %v326 = vand.u32 2147483647, %v306
        %v327 = vand.u32 2147483647, %v307
        %v328 = vand.u32 2147483647, %v320
        %v329 = vand.u32 2147483647, %v321
        %v330 = vand.u32 2147483647, %v322
        %v331 = vand.u32 2147483647, %v323
        %v332 = vadd.f32 %v324, %v328
        %v333 = vadd.f32 %v325, %v329
        %v334 = vadd.f32 %v326, %v330
        %v335 = vadd.f32 %v327, %v331
        %vm336 = vcmp.gt.f32.partialorder %v332, 0.0
        %vm337 = vcmp.gt.f32.partialorder %v333, 0.0
        %vm338 = vcmp.gt.f32.partialorder %v334, 0.0
        %vm339 = vcmp.gt.f32.partialorder %v335, 0.0
        %v340 = vsel %vm336, 1, 0
        %v341 = vsel %vm337, 1, 0
        %v342 = vsel %vm338, 1, 0
        %v343 = vsel %vm339, 1, 0
        %v344 = vcvt.s32.f32 %v340
        %v345 = vcvt.s32.f32 %v341
        %v346 = vcvt.s32.f32 %v342
        %v347 = vcvt.s32.f32 %v343
        %v348 = vlaneseq
        %v349 = vshrl.u32 %v348, 7
        %v350 = vadd.s32 %v349, 8
        %v351 = vadd.s32 %v349, 16
        %v352 = vadd.s32 %v349, 24
        %v353 = vlaneseq
        %v354 = vand.u32 %v353, 127
        %vm355 = vcmp.ge.s32.totalorder %v349, 8
        %vm356 = vcmp.ge.s32.totalorder %v350, 8
        %vm357 = vcmp.ge.s32.totalorder %v351, 8
        %vm358 = vcmp.ge.s32.totalorder %v352, 8
        %vm359 = vcmp.lt.s32.totalorder %v349, 24
        %vm360 = vcmp.lt.s32.totalorder %v350, 24
        %vm361 = vcmp.lt.s32.totalorder %v351, 24
        %vm362 = vcmp.lt.s32.totalorder %v352, 24
        %vm363 = vmand %vm355, %vm359
        %vm364 = vmand %vm356, %vm360
        %vm365 = vmand %vm357, %vm361
        %vm366 = vmand %vm358, %vm362
        %vm367 = vcmp.ge.s32.totalorder %v354, 8
        %vm368 = vmand %vm363, %vm367
        %vm369 = vmand %vm364, %vm367
        %vm370 = vmand %vm365, %vm367
        %vm371 = vmand %vm366, %vm367
        %vm372 = vcmp.lt.s32.totalorder %v354, 24
        %vm373 = vmand %vm368, %vm372
        %vm374 = vmand %vm369, %vm372
        %vm375 = vmand %vm370, %vm372
        %vm376 = vmand %vm371, %vm372
        %v377 = vsel %vm373, %v344, 0.0
        %v378 = vsel %vm374, %v345, 0.0
        %v379 = vsel %vm375, %v346, 0.0
        %v380 = vsel %vm376, %v347, 0.0
        %v381 = vmul.f32 %v377, 0.024340702
        %v382 = vmul.f32 %v378, 0.024340702
        %v383 = vmul.f32 %v379, 0.024340702
        %v384 = vmul.f32 %v380, 0.024340702
        %v385 = vadd.f32 %v381, 0.0
        %v386 = vadd.f32 %v382, 0.0
        %v387 = vadd.f32 %v383, 0.0
        %v388 = vadd.f32 %v384, 0.0
        %v389 = vmul.f32 %v377, 0.032856513
        %v390 = vmul.f32 %v378, 0.032856513
        %v391 = vmul.f32 %v379, 0.032856513
        %v392 = vmul.f32 %v380, 0.032856513
        %397 = vrot.lane.b32.xlu0 %v389, 127
        %v398 = vpop.permute.xlu0 %397
        %399 = vrot.lane.b32.xlu0 %v390, 127
        %v400 = vpop.permute.xlu0 %399
        %401 = vrot.lane.b32.xlu0 %v391, 127
        %v402 = vpop.permute.xlu0 %401
        %403 = vrot.lane.b32.xlu0 %v392, 127
        %v404 = vpop.permute.xlu0 %403
        %v409 = vadd.f32 %v385, %v398
        %v410 = vadd.f32 %v386, %v400
        %v411 = vadd.f32 %v387, %v402
        %v412 = vadd.f32 %v388, %v404
        %v413 = vmul.f32 %v377, 0.042612597
        %v414 = vmul.f32 %v378, 0.042612597
        %v415 = vmul.f32 %v379, 0.042612597
        %v416 = vmul.f32 %v380, 0.042612597
        %421 = vrot.lane.b32.xlu0 %v413, 126
        %v422 = vpop.permute.xlu0 %421
        %423 = vrot.lane.b32.xlu0 %v414, 126
        %v424 = vpop.permute.xlu0 %423
        %425 = vrot.lane.b32.xlu0 %v415, 126
        %v426 = vpop.permute.xlu0 %425
        %427 = vrot.lane.b32.xlu0 %v416, 126
        %v428 = vpop.permute.xlu0 %427
        %v433 = vadd.f32 %v409, %v422
        %v434 = vadd.f32 %v410, %v424
        %v435 = vadd.f32 %v411, %v426
        %v436 = vadd.f32 %v412, %v428
        %v437 = vmul.f32 %v377, 0.053098567
        %v438 = vmul.f32 %v378, 0.053098567
        %v439 = vmul.f32 %v379, 0.053098567
        %v440 = vmul.f32 %v380, 0.053098567
        %445 = vrot.lane.b32.xlu0 %v437, 125
        %v446 = vpop.permute.xlu0 %445
        %447 = vrot.lane.b32.xlu0 %v438, 125
        %v448 = vpop.permute.xlu0 %447
        %449 = vrot.lane.b32.xlu0 %v439, 125
        %v450 = vpop.permute.xlu0 %449
        %451 = vrot.lane.b32.xlu0 %v440, 125
        %v452 = vpop.permute.xlu0 %451
        %v457 = vadd.f32 %v433, %v446
        %v458 = vadd.f32 %v434, %v448
        %v459 = vadd.f32 %v435, %v450
        %v460 = vadd.f32 %v436, %v452
        %v461 = vmul.f32 %v377, 0.06357053
        %v462 = vmul.f32 %v378, 0.06357053
        %v463 = vmul.f32 %v379, 0.06357053
        %v464 = vmul.f32 %v380, 0.06357053
        %469 = vrot.lane.b32.xlu0 %v461, 124
        %v470 = vpop.permute.xlu0 %469
        %471 = vrot.lane.b32.xlu0 %v462, 124
        %v472 = vpop.permute.xlu0 %471
        %473 = vrot.lane.b32.xlu0 %v463, 124
        %v474 = vpop.permute.xlu0 %473
        %475 = vrot.lane.b32.xlu0 %v464, 124
        %v476 = vpop.permute.xlu0 %475
        %v481 = vadd.f32 %v457, %v470
        %v482 = vadd.f32 %v458, %v472
        %v483 = vadd.f32 %v459, %v474
        %v484 = vadd.f32 %v460, %v476
        %v485 = vmul.f32 %v377, 0.073123515
        %v486 = vmul.f32 %v378, 0.073123515
        %v487 = vmul.f32 %v379, 0.073123515
        %v488 = vmul.f32 %v380, 0.073123515
        %493 = vrot.lane.b32.xlu0 %v485, 123
        %v494 = vpop.permute.xlu0 %493
        %495 = vrot.lane.b32.xlu0 %v486, 123
        %v496 = vpop.permute.xlu0 %495
        %497 = vrot.lane.b32.xlu0 %v487, 123
        %v498 = vpop.permute.xlu0 %497
        %499 = vrot.lane.b32.xlu0 %v488, 123
        %v500 = vpop.permute.xlu0 %499
        %v505 = vadd.f32 %v481, %v494
        %v506 = vadd.f32 %v482, %v496
        %v507 = vadd.f32 %v483, %v498
        %v508 = vadd.f32 %v484, %v500
        %v509 = vmul.f32 %v377, 0.08081398
        %v510 = vmul.f32 %v378, 0.08081398
        %v511 = vmul.f32 %v379, 0.08081398
        %v512 = vmul.f32 %v380, 0.08081398
        %517 = vrot.lane.b32.xlu0 %v509, 122
        %v518 = vpop.permute.xlu0 %517
        %519 = vrot.lane.b32.xlu0 %v510, 122
        %v520 = vpop.permute.xlu0 %519
        %521 = vrot.lane.b32.xlu0 %v511, 122
        %v522 = vpop.permute.xlu0 %521
        %523 = vrot.lane.b32.xlu0 %v512, 122
        %v524 = vpop.permute.xlu0 %523
        %v529 = vadd.f32 %v505, %v518
        %v530 = vadd.f32 %v506, %v520
        %v531 = vadd.f32 %v507, %v522
        %v532 = vadd.f32 %v508, %v524
        %v533 = vmul.f32 %v377, 0.085811235
        %v534 = vmul.f32 %v378, 0.085811235
        %v535 = vmul.f32 %v379, 0.085811235
        %v536 = vmul.f32 %v380, 0.085811235
        %541 = vrot.lane.b32.xlu0 %v533, 121
        %v542 = vpop.permute.xlu0 %541
        %543 = vrot.lane.b32.xlu0 %v534, 121
        %v544 = vpop.permute.xlu0 %543
        %545 = vrot.lane.b32.xlu0 %v535, 121
        %v546 = vpop.permute.xlu0 %545
        %547 = vrot.lane.b32.xlu0 %v536, 121
        %v548 = vpop.permute.xlu0 %547
        %v553 = vadd.f32 %v529, %v542
        %v554 = vadd.f32 %v530, %v544
        %v555 = vadd.f32 %v531, %v546
        %v556 = vadd.f32 %v532, %v548
        %v557 = vmul.f32 %v377, 0.08754474
        %v558 = vmul.f32 %v378, 0.08754474
        %v559 = vmul.f32 %v379, 0.08754474
        %v560 = vmul.f32 %v380, 0.08754474
        %565 = vrot.lane.b32.xlu0 %v557, 120
        %v566 = vpop.permute.xlu0 %565
        %567 = vrot.lane.b32.xlu0 %v558, 120
        %v568 = vpop.permute.xlu0 %567
        %569 = vrot.lane.b32.xlu0 %v559, 120
        %v570 = vpop.permute.xlu0 %569
        %571 = vrot.lane.b32.xlu0 %v560, 120
        %v572 = vpop.permute.xlu0 %571
        %v577 = vadd.f32 %v553, %v566
        %v578 = vadd.f32 %v554, %v568
        %v579 = vadd.f32 %v555, %v570
        %v580 = vadd.f32 %v556, %v572
        %581 = vrot.lane.b32.xlu0 %v533, 119
        %v582 = vpop.permute.xlu0 %581
        %583 = vrot.lane.b32.xlu0 %v534, 119
        %v584 = vpop.permute.xlu0 %583
        %585 = vrot.lane.b32.xlu0 %v535, 119
        %v586 = vpop.permute.xlu0 %585
        %587 = vrot.lane.b32.xlu0 %v536, 119
        %v588 = vpop.permute.xlu0 %587
        %v593 = vadd.f32 %v577, %v582
        %v594 = vadd.f32 %v578, %v584
        %v595 = vadd.f32 %v579, %v586
        %v596 = vadd.f32 %v580, %v588
        %597 = vrot.lane.b32.xlu0 %v509, 118
        %v598 = vpop.permute.xlu0 %597
        %599 = vrot.lane.b32.xlu0 %v510, 118
        %v600 = vpop.permute.xlu0 %599
        %601 = vrot.lane.b32.xlu0 %v511, 118
        %v602 = vpop.permute.xlu0 %601
        %603 = vrot.lane.b32.xlu0 %v512, 118
        %v604 = vpop.permute.xlu0 %603
        %v609 = vadd.f32 %v593, %v598
        %v610 = vadd.f32 %v594, %v600
        %v611 = vadd.f32 %v595, %v602
        %v612 = vadd.f32 %v596, %v604
        %613 = vrot.lane.b32.xlu0 %v485, 117
        %v614 = vpop.permute.xlu0 %613
        %615 = vrot.lane.b32.xlu0 %v486, 117
        %v616 = vpop.permute.xlu0 %615
        %617 = vrot.lane.b32.xlu0 %v487, 117
        %v618 = vpop.permute.xlu0 %617
        %619 = vrot.lane.b32.xlu0 %v488, 117
        %v620 = vpop.permute.xlu0 %619
        %v625 = vadd.f32 %v609, %v614
        %v626 = vadd.f32 %v610, %v616
        %v627 = vadd.f32 %v611, %v618
        %v628 = vadd.f32 %v612, %v620
        %629 = vrot.lane.b32.xlu0 %v461, 116
        %v630 = vpop.permute.xlu0 %629
        %631 = vrot.lane.b32.xlu0 %v462, 116
        %v632 = vpop.permute.xlu0 %631
        %633 = vrot.lane.b32.xlu0 %v463, 116
        %v634 = vpop.permute.xlu0 %633
        %635 = vrot.lane.b32.xlu0 %v464, 116
        %v636 = vpop.permute.xlu0 %635
        %v641 = vadd.f32 %v625, %v630
        %v642 = vadd.f32 %v626, %v632
        %v643 = vadd.f32 %v627, %v634
        %v644 = vadd.f32 %v628, %v636
        %645 = vrot.lane.b32.xlu0 %v437, 115
        %v646 = vpop.permute.xlu0 %645
        %647 = vrot.lane.b32.xlu0 %v438, 115
        %v648 = vpop.permute.xlu0 %647
        %649 = vrot.lane.b32.xlu0 %v439, 115
        %v650 = vpop.permute.xlu0 %649
        %651 = vrot.lane.b32.xlu0 %v440, 115
        %v652 = vpop.permute.xlu0 %651
        %v657 = vadd.f32 %v641, %v646
        %v658 = vadd.f32 %v642, %v648
        %v659 = vadd.f32 %v643, %v650
        %v660 = vadd.f32 %v644, %v652
        %661 = vrot.lane.b32.xlu0 %v413, 114
        %v662 = vpop.permute.xlu0 %661
        %663 = vrot.lane.b32.xlu0 %v414, 114
        %v664 = vpop.permute.xlu0 %663
        %665 = vrot.lane.b32.xlu0 %v415, 114
        %v666 = vpop.permute.xlu0 %665
        %667 = vrot.lane.b32.xlu0 %v416, 114
        %v668 = vpop.permute.xlu0 %667
        %v673 = vadd.f32 %v657, %v662
        %v674 = vadd.f32 %v658, %v664
        %v675 = vadd.f32 %v659, %v666
        %v676 = vadd.f32 %v660, %v668
        %677 = vrot.lane.b32.xlu0 %v389, 113
        %v678 = vpop.permute.xlu0 %677
        %679 = vrot.lane.b32.xlu0 %v390, 113
        %v680 = vpop.permute.xlu0 %679
        %681 = vrot.lane.b32.xlu0 %v391, 113
        %v682 = vpop.permute.xlu0 %681
        %683 = vrot.lane.b32.xlu0 %v392, 113
        %v684 = vpop.permute.xlu0 %683
        %v689 = vadd.f32 %v673, %v678
        %v690 = vadd.f32 %v674, %v680
        %v691 = vadd.f32 %v675, %v682
        %v692 = vadd.f32 %v676, %v684
        %697 = vrot.lane.b32.xlu0 %v381, 112
        %v698 = vpop.permute.xlu0 %697
        %699 = vrot.lane.b32.xlu0 %v382, 112
        %v700 = vpop.permute.xlu0 %699
        %701 = vrot.lane.b32.xlu0 %v383, 112
        %v702 = vpop.permute.xlu0 %701
        %703 = vrot.lane.b32.xlu0 %v384, 112
        %v704 = vpop.permute.xlu0 %703
        %v709 = vadd.f32 %v689, %v698
        %v710 = vadd.f32 %v690, %v700
        %v711 = vadd.f32 %v691, %v702
        %v712 = vadd.f32 %v692, %v704
        %v713 = vmul.f32 %v709, 0.024340702
        %v714 = vmul.f32 %v710, 0.024340702
        %v715 = vadd.f32 %v713, 0.0
        %v716 = vadd.f32 %v714, 0.0
        %v717 = vmul.f32 %v709, 0.032856513
        %v718 = vmul.f32 %v710, 0.032856513
        %v719 = vmul.f32 %v711, 0.032856513
        %v723 = vrot.slane %v717, 1
        %v724 = vrot.slane %v718, 1
        %v725 = vsel %vm176, %v723, %v724
        %v726 = vrot.slane %v719, 1
        %v727 = vsel %vm176, %v724, %v726
        %v730 = vadd.f32 %v715, %v725
        %v731 = vadd.f32 %v716, %v727
        %v732 = vmul.f32 %v709, 0.042612597
        %v733 = vmul.f32 %v710, 0.042612597
        %v734 = vmul.f32 %v711, 0.042612597
        %v738 = vrot.slane %v732, 2
        %v739 = vrot.slane %v733, 2
        %v740 = vsel %vm231, %v738, %v739
        %v741 = vrot.slane %v734, 2
        %v742 = vsel %vm231, %v739, %v741
        %v745 = vadd.f32 %v730, %v740
        %v746 = vadd.f32 %v731, %v742
        %v747 = vmul.f32 %v709, 0.053098567
        %v748 = vmul.f32 %v710, 0.053098567
        %v749 = vmul.f32 %v711, 0.053098567
        %vm753 = vcmask 1044480
        %v754 = vrot.slane %v747, 3
        %v755 = vrot.slane %v748, 3
        %v756 = vsel %vm753, %v754, %v755
        %v757 = vrot.slane %v749, 3
        %v758 = vsel %vm753, %v755, %v757
        %v761 = vadd.f32 %v745, %v756
        %v762 = vadd.f32 %v746, %v758
        %v763 = vmul.f32 %v709, 0.06357053
        %v764 = vmul.f32 %v710, 0.06357053
        %v765 = vmul.f32 %v711, 0.06357053
        %vm769 = vcmask 1043456
        %v770 = vrot.slane %v763, 4
        %v771 = vrot.slane %v764, 4
        %v772 = vsel %vm769, %v770, %v771
        %v773 = vrot.slane %v765, 4
        %v774 = vsel %vm769, %v771, %v773
        %v777 = vadd.f32 %v761, %v772
        %v778 = vadd.f32 %v762, %v774
        %v779 = vmul.f32 %v709, 0.073123515
        %v780 = vmul.f32 %v710, 0.073123515
        %v781 = vmul.f32 %v711, 0.073123515
        %vm785 = vcmask 1042432
        %v786 = vrot.slane %v779, 5
        %v787 = vrot.slane %v780, 5
        %v788 = vsel %vm785, %v786, %v787
        %v789 = vrot.slane %v781, 5
        %v790 = vsel %vm785, %v787, %v789
        %v793 = vadd.f32 %v777, %v788
        %v794 = vadd.f32 %v778, %v790
        %v795 = vmul.f32 %v709, 0.08081398
        %v796 = vmul.f32 %v710, 0.08081398
        %v797 = vmul.f32 %v711, 0.08081398
        %vm801 = vcmask 1041408
        %v802 = vrot.slane %v795, 6
        %v803 = vrot.slane %v796, 6
        %v804 = vsel %vm801, %v802, %v803
        %v805 = vrot.slane %v797, 6
        %v806 = vsel %vm801, %v803, %v805
        %v809 = vadd.f32 %v793, %v804
        %v810 = vadd.f32 %v794, %v806
        %v811 = vmul.f32 %v709, 0.085811235
        %v812 = vmul.f32 %v710, 0.085811235
        %v813 = vmul.f32 %v711, 0.085811235
        %vm817 = vcmask 1040384
        %v818 = vrot.slane %v811, 7
        %v819 = vrot.slane %v812, 7
        %v820 = vsel %vm817, %v818, %v819
        %v821 = vrot.slane %v813, 7
        %v822 = vsel %vm817, %v819, %v821
        %v825 = vadd.f32 %v809, %v820
        %v826 = vadd.f32 %v810, %v822
        %v827 = vmul.f32 %v710, 0.08754474
        %v828 = vmul.f32 %v711, 0.08754474
        %v829 = vadd.f32 %v825, %v827
        %v830 = vadd.f32 %v826, %v828
        %v831 = vmul.f32 %v712, 0.085811235
        %v833 = vrot.slane %v812, 1
        %v834 = vrot.slane %v813, 1
        %v835 = vsel %vm176, %v833, %v834
        %v836 = vrot.slane %v831, 1
        %v837 = vsel %vm176, %v834, %v836
        %v840 = vadd.f32 %v829, %v835
        %v841 = vadd.f32 %v830, %v837
        %v842 = vmul.f32 %v712, 0.08081398
        %v844 = vrot.slane %v796, 2
        %v845 = vrot.slane %v797, 2
        %v846 = vsel %vm231, %v844, %v845
        %v847 = vrot.slane %v842, 2
        %v848 = vsel %vm231, %v845, %v847
        %v851 = vadd.f32 %v840, %v846
        %v852 = vadd.f32 %v841, %v848
        %v853 = vmul.f32 %v712, 0.073123515
        %v855 = vrot.slane %v780, 3
        %v856 = vrot.slane %v781, 3
        %v857 = vsel %vm753, %v855, %v856
        %v858 = vrot.slane %v853, 3
        %v859 = vsel %vm753, %v856, %v858
        %v862 = vadd.f32 %v851, %v857
        %v863 = vadd.f32 %v852, %v859
        %v864 = vmul.f32 %v712, 0.06357053
        %v866 = vrot.slane %v864, 4
        %v867 = vsel %vm769, %v773, %v866
        %v869 = vadd.f32 %v862, %v774
        %v870 = vadd.f32 %v863, %v867
        %v871 = vmul.f32 %v712, 0.053098567
        %v873 = vrot.slane %v748, 5
        %v874 = vrot.slane %v749, 5
        %v875 = vsel %vm785, %v873, %v874
        %v876 = vrot.slane %v871, 5
        %v877 = vsel %vm785, %v874, %v876
        %v880 = vadd.f32 %v869, %v875
        %v881 = vadd.f32 %v870, %v877
        %v882 = vmul.f32 %v712, 0.042612597
        %v884 = vrot.slane %v733, 6
        %v885 = vrot.slane %v734, 6
        %v886 = vsel %vm801, %v884, %v885
        %v887 = vrot.slane %v882, 6
        %v888 = vsel %vm801, %v885, %v887
        %v891 = vadd.f32 %v880, %v886
        %v892 = vadd.f32 %v881, %v888
        %v893 = vmul.f32 %v712, 0.032856513
        %v895 = vrot.slane %v718, 7
        %v896 = vrot.slane %v719, 7
        %v897 = vsel %vm817, %v895, %v896
        %v898 = vrot.slane %v893, 7
        %v899 = vsel %vm817, %v896, %v898
        %v902 = vadd.f32 %v891, %v897
        %v903 = vadd.f32 %v892, %v899
        %v904 = vmul.f32 %v711, 0.024340702
        %v905 = vmul.f32 %v712, 0.024340702
        %v906 = vadd.f32 %v902, %v904
        %v907 = vadd.f32 %v903, %v905
        %v908 = vld [vmem:[%s0 + $0x8] sm:$0xff]
        %v909 = vld [vmem:[%s0 + $0x10] sm:$0xff]
        %v910 = vld [vmem:[%s0 + $0x18] sm:$0xff]
        %v911 = vld [vmem:[%s0 + $0x30] sm:$0xff]
        %v912 = vld [vmem:[%s0 + $0x38] sm:$0xff]
        %v913 = vld [vmem:[%s0 + $0x40] sm:$0xff]
        %v914 = vmul.f32 %v908, 0.00390625
        %v915 = vmul.f32 %v909, 0.00390625
        %v916 = vmul.f32 %v910, 0.00390625
        %v917 = vmul.f32 %v911, 0.00390625
        %v918 = vmul.f32 %v912, 0.00390625
        %v919 = vmul.f32 %v913, 0.00390625
        %v920 = vmul.f32 %v98, %v914
        %v921 = vmul.f32 %v99, %v915
        %v922 = vmul.f32 %v100, %v916
        %v923 = vmul.f32 %v98, %v917
        %v924 = vmul.f32 %v99, %v918
        %v925 = vmul.f32 %v100, %v919
        %v926 = vsub.f32 1.0, %v98
        %v927 = vsub.f32 1.0, %v99
        %v928 = vsub.f32 1.0, %v100
        %v929 = vsub.f32 1.0, %v914
        %v930 = vsub.f32 1.0, %v915
        %v931 = vsub.f32 1.0, %v916
        %v932 = vsub.f32 1.0, %v917
        %v933 = vsub.f32 1.0, %v918
        %v934 = vsub.f32 1.0, %v919
        %v935 = vmul.f32 %v926, %v929
        %v936 = vmul.f32 %v927, %v930
        %v937 = vmul.f32 %v928, %v931
        %v938 = vmul.f32 %v926, %v932
        %v939 = vmul.f32 %v927, %v933
        %v940 = vmul.f32 %v928, %v934
        %v941 = vadd.f32 %v920, %v935
        %v942 = vadd.f32 %v921, %v936
        %v943 = vadd.f32 %v922, %v937
        %v944 = vadd.f32 %v923, %v938
        %v945 = vadd.f32 %v924, %v939
        %v946 = vadd.f32 %v925, %v940
        %v947 = vmul.f32 %v906, 5.0
        %v948 = vmul.f32 %v907, 5.0
        %v955 = vrot.slane %v941, 1
        %v956 = vrot.slane %v942, 1
        %v957 = vsel %vm176, %v955, %v956
        %v958 = vrot.slane %v943, 1
        %v959 = vsel %vm176, %v956, %v958
        %v960 = vrot.slane %v944, 1
        %v961 = vrot.slane %v945, 1
        %v962 = vsel %vm176, %v960, %v961
        %v963 = vrot.slane %v946, 1
        %v964 = vsel %vm176, %v961, %v963
        %965 = vrot.lane.b32.xlu0 %v957, 119
        %v966 = vpop.permute.xlu0 %965
        %967 = vrot.lane.b32.xlu0 %v959, 119
        %v968 = vpop.permute.xlu0 %967
        %969 = vrot.lane.b32.xlu0 %v962, 119
        %v970 = vpop.permute.xlu0 %969
        %971 = vrot.lane.b32.xlu0 %v964, 119
        %v972 = vpop.permute.xlu0 %971
        %v977 = vadd.f32 %v947, %v966
        %v978 = vadd.f32 %v948, %v968
        %v979 = vadd.f32 %v947, %v970
        %v980 = vadd.f32 %v948, %v972
        %vm981 = vcmask 130048
        %982 = vst.msk [vmem:[%s94] sm:$0xff] %vm981, %v977
        %983 = vst.msk [vmem:[%s94 + $0x8] sm:$0xff] %vm981, %v978
        %984 = vst.msk [vmem:[%s94 + $0x10] sm:$0xff] %vm981, %v979
        %985 = vst.msk [vmem:[%s94 + $0x18] sm:$0xff] %vm981, %v980
        %s986 = sand.u32 %s44, 1
        %s987 = scalar_lea.sflag [#allocation3], %s986
        %s988 = sand.u32 %s44, 1
        %s989 = smul.addr %s988, 32
        %s990 = scalar_lea.vmem [#allocation2], %s989
        // Predicated region
        $region25: #{weight_map_forward.1} parent=23 // pred_check
          %p991 = pneg %p54
        $region26: #{weight_map_forward.1} parent=23 // pred_check_branch
          %993 = sbr.rel (%p991) target = $region28
        $region27: #{weight_map_forward.1} parent=23 // pred_region
          %995 = vsyncadd %s987, 0
          %s996 = smul.addr %s15, 4
          %s997 = smul.addr %s996, 8
          %s998 = scalar_lea.hbm %s1, %s997
          %s999 = sshll.u32 %s990, 4
          %s1000 = int_to_ptr.vmem [resolvable:$true] %s999
          %s1001 = sshll.u32 %s998, 4
          %s1002 = int_to_ptr.hbm [resolvable:$true] %s1001
          %1007 = dma.vmem_to_hbm [thread:$0]  %s1000, 512, %s1002, %s987, 128, 128, 8
        $region28: #{weight_map_forward.1} parent=23 // pred_fallthru
          _
      $region24: #{weight_map_forward.1} parent=5 // pred_fallthru
        _
      %p1008 = scmp.le.s32.totalorder 2, %s10
      // Predicated region
      $region29: #{weight_map_forward.1} parent=5 // pred_check
        %p1009 = pneg %p1008
      $region30: #{weight_map_forward.1} parent=5 // pred_check_branch
        %1011 = sbr.rel (%p1009) target = $region32
      $region31: #{weight_map_forward.1} parent=5 // pred_region
        %s1012 = ssub.s32 %s10, 2
        // Predicated region
        $region33: #{weight_map_forward.1} parent=31 // pred_check
          %p1013 = pneg %p60
        $region34: #{weight_map_forward.1} parent=31 // pred_check_branch
          %1015 = sbr.rel (%p1013) target = $region36
        $region35: #{weight_map_forward.1} parent=31 // pred_region
          %s1016 = sand.u32 %s45, 1
          %s1017 = scalar_lea.sflag [#allocation3], %s1016
          %s1018 = sand.u32 %s45, 1
          %s1019 = smul.addr %s1018, 32
          %s1020 = scalar_lea.vmem [#allocation2], %s1019
          %1022 = dma.done %s1017, 512
        $region36: #{weight_map_forward.1} parent=31 // pred_fallthru
          _
      $region32: #{weight_map_forward.1} parent=5 // pred_fallthru
        _
    $region6: #{weight_map_forward.1} parent=1 // loop_footer
      %s14 = sadd.s32 1, %s10
    $region7: #{weight_map_forward.1} parent=1 // loop_footer_branch
      %9 = sbr.rel target = $region3
    $region8: #{weight_map_forward.1} parent=1 // loop_exit
      _
    %1023 = vsyncpa [#allocation3], 1
    %s1024 = scalar_lea.sflag [#allocation3], 1
    %1025 = vsyncpa %s1024, 1

</llo_original>
